<compile_context>
chip_gen: v5e
topology: v5e:2x2
jax: 0.10.0
libtpu: 0.0.40
codegen_flags: <defaults>
</compile_context>

<pallas_src>
import jax
import jax.numpy as jnp
from jax.experimental import pallas as pl
from jax.experimental.pallas import tpu as pltpu


# ---------------- config (stands in for Cfgs) ----------------
class Cfgs:
    FEAT_SIZE = {"vqa": {"FRCN_FEAT_SIZE": (8, 32)}}  # (num_boxes N, frcn dim F)
    USE_BBOX_FEAT = True
    BBOXFEAT_EMB_SIZE = 16
    HIDDEN_SIZE = 32


# ---------------- kernel ----------------
def adapter_kernel(x_ref, bbox_ref, wb_ref, bb_ref, wf1_ref, wf2_ref, bf_ref,
                   out_ref):
    x = x_ref[...]        # (TILE_R, F) bf16
    bb = bbox_ref[...]    # (TILE_R, 5) f32

    # bbox_linear on the VPU: K=5 would waste a full MXU fill/drain, so do it
    # as 5 broadcast multiply-adds (f32) instead.
    acc = bb[:, 0:1] * wb_ref[0:1, :]
    for k in range(1, 5):
        acc = acc + bb[:, k:k + 1] * wb_ref[k:k + 1, :]
    bbox_emb = acc + bb_ref[...]                       # (TILE_R, E) f32

    # frcn_linear on cat(x, bbox_emb) == split matmul (exact), bf16 in / f32 acc.
    y = jnp.dot(x, wf1_ref[...], preferred_element_type=jnp.float32)
    y = y + jnp.dot(bbox_emb.astype(jnp.bfloat16), wf2_ref[...],
                    preferred_element_type=jnp.float32)
    y = y + bf_ref[...]
    out_ref[...] = y.astype(out_ref.dtype)


# ---------------- tiling helper ----------------
def _pick_row_tile(rows):
    # Multiple of 8 (sublane), target 256-row LHS tiles at scale (v6e/v7x MXU
    # is 256 deep), and keep >=2 grid steps whenever possible so both v7x
    # TensorCores are used via dimension_semantics=("parallel",).
    if rows >= 512:
        return 256
    if rows >= 256:
        return 128
    if rows <= 8:
        return 8
    half = -(-rows // 2)                  # ceil(rows / 2)
    return ((half + 7) // 8) * 8


# ---------------- wrapper ----------------
def adapter_forward(frcn_feat, bbox_feat, params, cfg=Cfgs):
    B, N, F = frcn_feat.shape
    E = cfg.BBOXFEAT_EMB_SIZE
    H = cfg.HIDDEN_SIZE
    rows = B * N

    tile_r = _pick_row_tile(rows)
    grid_r = pl.cdiv(rows, tile_r)
    rows_pad = grid_r * tile_r

    # Flatten (B, N) -> rows; pad rows to a multiple of the tile (zero rows are
    # harmless: they are computed and sliced off below).
    x = frcn_feat.reshape(rows, F)
    bbx = bbox_feat.reshape(rows, 5)
    if rows_pad != rows:
        x = jnp.pad(x, ((0, rows_pad - rows), (0, 0)))
        bbx = jnp.pad(bbx, ((0, rows_pad - rows), (0, 0)))

    # bf16 for the MXU dots; bbox path (VPU FMAs) and biases stay f32.
    x_bf16 = x.astype(jnp.bfloat16)
    wb = params["bbox_w"].astype(jnp.float32)                # (5, E)
    bb = params["bbox_b"].reshape(1, E).astype(jnp.float32)  # (1, E)
    wf = params["frcn_w"]                                    # (F + E, H)
    wf1 = wf[:F].astype(jnp.bfloat16)                        # (F, H)
    wf2 = wf[F:].astype(jnp.bfloat16)                        # (E, H)
    bf = params["frcn_b"].reshape(1, H).astype(jnp.float32)  # (1, H)

    out = pl.pallas_call(
        adapter_kernel,
        out_shape=jax.ShapeDtypeStruct((rows_pad, H), jnp.float32),
        grid_spec=pltpu.PrefetchScalarGridSpec(
            num_scalar_prefetch=0,
            grid=(grid_r,),
            in_specs=[
                pl.BlockSpec((tile_r, F), lambda r: (r, 0)),
                pl.BlockSpec((tile_r, 5), lambda r: (r, 0)),
                pl.BlockSpec((5, E), lambda r: (0, 0)),
                pl.BlockSpec((1, E), lambda r: (0, 0)),
                pl.BlockSpec((F, H), lambda r: (0, 0)),
                pl.BlockSpec((E, H), lambda r: (0, 0)),
                pl.BlockSpec((1, H), lambda r: (0, 0)),
            ],
            out_specs=pl.BlockSpec((tile_r, H), lambda r: (r, 0)),
        ),
        compiler_params=pltpu.CompilerParams(
            dimension_semantics=("parallel",)),
        # NOTE: at realistic VQA sizes (F~2048, H~1024) set vmem_limit_bytes
        # and shrink tile_r on v7x (64 MiB physical VMEM vs 128 MiB v5e/v6e).
    )(x_bf16, bbx, wb, bb, wf1, wf2, bf)

    img_feat = out[:rows].reshape(B, N, H)

    # make_mask(...) glue: a single fused reduce in XLA, exact same semantics
    # as (sum(|feat|, -1) == 0).unsqueeze(1).unsqueeze(2).
    img_feat_mask = (jnp.sum(jnp.abs(frcn_feat), axis=-1) == 0)[:, None, None, :]
    return img_feat, img_feat_mask


# ---------------- pure-JAX reference ----------------
def adapter_ref(frcn_feat, bbox_feat, params, cfg=Cfgs):
    mask = (jnp.sum(jnp.abs(frcn_feat), axis=-1) == 0)[:, None, None, :]
    bbox_emb = bbox_feat @ params["bbox_w"] + params["bbox_b"]
    cat = jnp.concatenate([frcn_feat, bbox_emb], axis=-1)
    img_feat = cat @ params["frcn_w"] + params["frcn_b"]
    return img_feat, mask


# ---------------- main ----------------
if __name__ == "__main__":
    B = 2
    N, F = Cfgs.FEAT_SIZE["vqa"]["FRCN_FEAT_SIZE"]   # (8, 32)
    E = Cfgs.BBOXFEAT_EMB_SIZE
    H = Cfgs.HIDDEN_SIZE

    key = jax.random.PRNGKey(0)
    k1, k2, k3, k4, k5, k6 = jax.random.split(key, 6)

    frcn_feat = jax.random.normal(k1, (B, N, F), dtype=jnp.float32)
    # zero out a couple of rows so the mask is non-trivial
    frcn_feat = frcn_feat.at[0, 3].set(0.0).at[1, 6].set(0.0)
    bbox_feat = jax.random.normal(k2, (B, N, 5), dtype=jnp.float32)

    params = {
        "bbox_w": jax.random.normal(k3, (5, E), dtype=jnp.float32) * 0.1,
        "bbox_b": jax.random.normal(k4, (E,), dtype=jnp.float32) * 0.1,
        "frcn_w": jax.random.normal(k5, (F + E, H), dtype=jnp.float32) * 0.05,
        "frcn_b": jax.random.normal(k6, (H,), dtype=jnp.float32) * 0.05,
    }

    img_feat, img_mask = adapter_forward(frcn_feat, bbox_feat, params)
    jax.block_until_ready(img_feat)
    jax.block_until_ready(img_mask)

    ref_feat, ref_mask = adapter_ref(frcn_feat, bbox_feat, params)
    assert img_feat.shape == (B, N, H)
    assert img_mask.shape == (B, 1, 1, N) and img_mask.dtype == jnp.bool_
    # bf16 matmul inputs with f32 accumulation -> relaxed tolerance vs f32 ref.
    assert jnp.allclose(img_feat, ref_feat, atol=2e-2, rtol=2e-2)
    assert jnp.array_equal(img_mask, ref_mask)

    print("KERNEL_OK")
</pallas_src>

<mosaic_0001>
module attributes {stable_mosaic.version = 11 : i64} {
  func.func @adapter_kernel(%arg0: i32, %arg1: memref<8x32xbf16, #tpu.memory_space<vmem>>, %arg2: memref<8x5xf32, #tpu.memory_space<vmem>>, %arg3: memref<5x16xf32, #tpu.memory_space<vmem>>, %arg4: memref<1x16xf32, #tpu.memory_space<vmem>>, %arg5: memref<32x32xbf16, #tpu.memory_space<vmem>>, %arg6: memref<16x32xbf16, #tpu.memory_space<vmem>>, %arg7: memref<1x32xf32, #tpu.memory_space<vmem>>, %arg8: memref<8x32xf32, #tpu.memory_space<vmem>>) attributes {dimension_semantics = [#tpu.dimension_semantics<parallel>], iteration_bounds = array<i64: 2>, scalar_prefetch = 0 : i64, scratch_operands = 0 : i64, tpu.core_type = #tpu.core_type<tc>, window_params = [{transform_indices = @transform_0, window_bounds = array<i64: 8, 32>}, {transform_indices = @transform_1, window_bounds = array<i64: 8, 5>}, {pipeline_mode = #tpu.pipeline_mode<synchronous>, transform_indices = @transform_2, window_bounds = array<i64: 5, 16>}, {pipeline_mode = #tpu.pipeline_mode<synchronous>, transform_indices = @transform_3, window_bounds = array<i64: 1, 16>}, {pipeline_mode = #tpu.pipeline_mode<synchronous>, transform_indices = @transform_4, window_bounds = array<i64: 32, 32>}, {pipeline_mode = #tpu.pipeline_mode<synchronous>, transform_indices = @transform_5, window_bounds = array<i64: 16, 32>}, {pipeline_mode = #tpu.pipeline_mode<synchronous>, transform_indices = @transform_6, window_bounds = array<i64: 1, 32>}, {transform_indices = @transform_7, window_bounds = array<i64: 8, 32>}]} {
    %c0 = arith.constant 0 : index
    %c0_0 = arith.constant 0 : index
    %0 = vector.load %arg1[%c0, %c0_0] : memref<8x32xbf16, #tpu.memory_space<vmem>>, vector<8x32xbf16>
    %c0_1 = arith.constant 0 : index
    %c0_2 = arith.constant 0 : index
    %1 = vector.load %arg2[%c0_1, %c0_2] : memref<8x5xf32, #tpu.memory_space<vmem>>, vector<8x5xf32>
    %2 = vector.extract_strided_slice %1 {offsets = [0, 0], sizes = [8, 1], strides = [1, 1]} : vector<8x5xf32> to vector<8x1xf32>
    %c0_3 = arith.constant 0 : index
    %c0_4 = arith.constant 0 : index
    %3 = vector.load %arg3[%c0_3, %c0_4] : memref<5x16xf32, #tpu.memory_space<vmem>>, vector<1x16xf32>
    %4 = vector.broadcast %2 : vector<8x1xf32> to vector<8x16xf32>
    %5 = vector.broadcast %3 : vector<1x16xf32> to vector<8x16xf32>
    %6 = arith.mulf %4, %5 : vector<8x16xf32>
    %7 = vector.extract_strided_slice %1 {offsets = [0, 1], sizes = [8, 1], strides = [1, 1]} : vector<8x5xf32> to vector<8x1xf32>
    %c1 = arith.constant 1 : index
    %c0_5 = arith.constant 0 : index
    %8 = vector.load %arg3[%c1, %c0_5] : memref<5x16xf32, #tpu.memory_space<vmem>>, vector<1x16xf32>
    %9 = vector.broadcast %7 : vector<8x1xf32> to vector<8x16xf32>
    %10 = vector.broadcast %8 : vector<1x16xf32> to vector<8x16xf32>
    %11 = arith.mulf %9, %10 : vector<8x16xf32>
    %12 = arith.addf %6, %11 : vector<8x16xf32>
    %13 = vector.extract_strided_slice %1 {offsets = [0, 2], sizes = [8, 1], strides = [1, 1]} : vector<8x5xf32> to vector<8x1xf32>
    %c2 = arith.constant 2 : index
    %c0_6 = arith.constant 0 : index
    %14 = vector.load %arg3[%c2, %c0_6] : memref<5x16xf32, #tpu.memory_space<vmem>>, vector<1x16xf32>
    %15 = vector.broadcast %13 : vector<8x1xf32> to vector<8x16xf32>
    %16 = vector.broadcast %14 : vector<1x16xf32> to vector<8x16xf32>
    %17 = arith.mulf %15, %16 : vector<8x16xf32>
    %18 = arith.addf %12, %17 : vector<8x16xf32>
    %19 = vector.extract_strided_slice %1 {offsets = [0, 3], sizes = [8, 1], strides = [1, 1]} : vector<8x5xf32> to vector<8x1xf32>
    %c3 = arith.constant 3 : index
    %c0_7 = arith.constant 0 : index
    %20 = vector.load %arg3[%c3, %c0_7] : memref<5x16xf32, #tpu.memory_space<vmem>>, vector<1x16xf32>
    %21 = vector.broadcast %19 : vector<8x1xf32> to vector<8x16xf32>
    %22 = vector.broadcast %20 : vector<1x16xf32> to vector<8x16xf32>
    %23 = arith.mulf %21, %22 : vector<8x16xf32>
    %24 = arith.addf %18, %23 : vector<8x16xf32>
    %25 = vector.extract_strided_slice %1 {offsets = [0, 4], sizes = [8, 1], strides = [1, 1]} : vector<8x5xf32> to vector<8x1xf32>
    %c4 = arith.constant 4 : index
    %c0_8 = arith.constant 0 : index
    %26 = vector.load %arg3[%c4, %c0_8] : memref<5x16xf32, #tpu.memory_space<vmem>>, vector<1x16xf32>
    %27 = vector.broadcast %25 : vector<8x1xf32> to vector<8x16xf32>
    %28 = vector.broadcast %26 : vector<1x16xf32> to vector<8x16xf32>
    %29 = arith.mulf %27, %28 : vector<8x16xf32>
    %30 = arith.addf %24, %29 : vector<8x16xf32>
    %c0_9 = arith.constant 0 : index
    %c0_10 = arith.constant 0 : index
    %31 = vector.load %arg4[%c0_9, %c0_10] : memref<1x16xf32, #tpu.memory_space<vmem>>, vector<1x16xf32>
    %32 = vector.broadcast %31 : vector<1x16xf32> to vector<8x16xf32>
    %33 = arith.addf %30, %32 : vector<8x16xf32>
    %c0_11 = arith.constant 0 : index
    %c0_12 = arith.constant 0 : index
    %34 = vector.load %arg5[%c0_11, %c0_12] : memref<32x32xbf16, #tpu.memory_space<vmem>>, vector<32x32xbf16>
    %cst = arith.constant dense<0.000000e+00> : vector<8x32xf32>
    %35 = tpu.matmul %0, %34, %cst {dimension_numbers = #tpu.dot_dimension_numbers<[1], [0], [0], [1], [0, 0, 1, 1], [], []>} : vector<8x32xbf16>, vector<32x32xbf16>, vector<8x32xf32> -> vector<8x32xf32>
    %36 = arith.truncf %33 : vector<8x16xf32> to vector<8x16xbf16>
    %c0_13 = arith.constant 0 : index
    %c0_14 = arith.constant 0 : index
    %37 = vector.load %arg6[%c0_13, %c0_14] : memref<16x32xbf16, #tpu.memory_space<vmem>>, vector<16x32xbf16>
    %cst_15 = arith.constant dense<0.000000e+00> : vector<8x32xf32>
    %38 = tpu.matmul %36, %37, %cst_15 {dimension_numbers = #tpu.dot_dimension_numbers<[1], [0], [0], [1], [0, 0, 1, 1], [], []>} : vector<8x16xbf16>, vector<16x32xbf16>, vector<8x32xf32> -> vector<8x32xf32>
    %39 = arith.addf %35, %38 : vector<8x32xf32>
    %c0_16 = arith.constant 0 : index
    %c0_17 = arith.constant 0 : index
    %40 = vector.load %arg7[%c0_16, %c0_17] : memref<1x32xf32, #tpu.memory_space<vmem>>, vector<1x32xf32>
    %41 = vector.broadcast %40 : vector<1x32xf32> to vector<8x32xf32>
    %42 = arith.addf %39, %41 : vector<8x32xf32>
    %c0_18 = arith.constant 0 : index
    %c0_19 = arith.constant 0 : index
    %43 = vector.load %arg8[%c0_18, %c0_19] : memref<8x32xf32, #tpu.memory_space<vmem>>, vector<8x32xf32>
    tpu.vector_store %arg8[%c0_18, %c0_19], %42 {strides = array<i32>} : memref<8x32xf32, #tpu.memory_space<vmem>>, vector<8x32xf32>,
    return
  }
  func.func @transform_0(%arg0: i32) -> (i32, i32) {
    %c0_i32 = arith.constant 0 : i32
    %c0_i32_0 = arith.constant 0 : i32
    return %arg0, %c0_i32 : i32, i32
  }
  func.func @transform_1(%arg0: i32) -> (i32, i32) {
    %c0_i32 = arith.constant 0 : i32
    %c0_i32_0 = arith.constant 0 : i32
    return %arg0, %c0_i32 : i32, i32
  }
  func.func @transform_2(%arg0: i32) -> (i32, i32) {
    %c0_i32 = arith.constant 0 : i32
    %c0_i32_0 = arith.constant 0 : i32
    %c0_i32_1 = arith.constant 0 : i32
    return %c0_i32, %c0_i32_0 : i32, i32
  }
  func.func @transform_3(%arg0: i32) -> (i32, i32) {
    %c0_i32 = arith.constant 0 : i32
    %c0_i32_0 = arith.constant 0 : i32
    %c0_i32_1 = arith.constant 0 : i32
    return %c0_i32, %c0_i32_0 : i32, i32
  }
  func.func @transform_4(%arg0: i32) -> (i32, i32) {
    %c0_i32 = arith.constant 0 : i32
    %c0_i32_0 = arith.constant 0 : i32
    %c0_i32_1 = arith.constant 0 : i32
    return %c0_i32, %c0_i32_0 : i32, i32
  }
  func.func @transform_5(%arg0: i32) -> (i32, i32) {
    %c0_i32 = arith.constant 0 : i32
    %c0_i32_0 = arith.constant 0 : i32
    %c0_i32_1 = arith.constant 0 : i32
    return %c0_i32, %c0_i32_0 : i32, i32
  }
  func.func @transform_6(%arg0: i32) -> (i32, i32) {
    %c0_i32 = arith.constant 0 : i32
    %c0_i32_0 = arith.constant 0 : i32
    %c0_i32_1 = arith.constant 0 : i32
    return %c0_i32, %c0_i32_0 : i32, i32
  }
  func.func @transform_7(%arg0: i32) -> (i32, i32) {
    %c0_i32 = arith.constant 0 : i32
    %c0_i32_0 = arith.constant 0 : i32
    return %arg0, %c0_i32 : i32, i32
  }
}

</mosaic_0001>

<llo_original>
// kernel: tpu_custom_call.1
$region0: #{tpu_custom_call.1}
  #allocation0 [shape = 'u32[]', space=smem, size = 0x4, offset = 0x4, fixed_abs, tag = 'smem constant byte address 0x4 - core index']
  #allocation1 [shape = 'u32[72,128]{1,0:T(1,128)}', space=vmem, size = 0x9000, scoped, tag = 'internal scratch']
  %s0 = inlined_call_operand.vmem [shape: bf16[16,32], index: 0, kind: input, shape index: {}]
  %s1 = inlined_call_operand.vmem [shape: f32[16,5], index: 1, kind: input, shape index: {}]
  %s2 = inlined_call_operand.hbm [shape: f32[5,16], index: 2, kind: input, shape index: {}]
  %s3 = inlined_call_operand.vmem [shape: f32[1,16], index: 3, kind: input, shape index: {}]
  %s4 = inlined_call_operand.vmem [shape: bf16[32,32], index: 4, kind: input, shape index: {}]
  %s5 = inlined_call_operand.hbm [shape: bf16[16,32], index: 5, kind: input, shape index: {}]
  %s6 = inlined_call_operand.vmem [shape: f32[1,32], index: 6, kind: input, shape index: {}]
  %s7 = inlined_call_operand.hbm [shape: f32[16,32], index: 7, kind: output, shape index: {}]
  %s8 = sld [smem:[#allocation0]]
  $region69: #{tpu_custom_call.1} parent=0
    _
  %s10 = ssub.s32 1, %s8
  %s11 = scalar_select 0, %s10, %s8
  $region1: #{tpu_custom_call.1} parent=0
    #allocation2 [shape = 'u8[4096]{0}', space=vmem, size = 0x1000, scoped, tag = 'input window, operand 2, single buffered']
    #allocation3 [shape = 's32[2]{0}', space=sflag, size = 0x8, scoped, tag = 'scoped memory for tpu_custom_call.1']
    #allocation4 [shape = 's32[2]{0}', space=sflag, size = 0x8, scoped, tag = 'scoped memory for tpu_custom_call.1']
    #allocation5 [shape = 'u8[4096]{0}', space=vmem, size = 0x1000, scoped, tag = 'input window, operand 5, single buffered']
    #allocation6 [shape = 's32[1]{0}', space=sflag, size = 0x4, scoped, tag = 'scoped memory for tpu_custom_call.1']
    #allocation7 [shape = 'u8[8192]{0}', space=vmem, size = 0x2000, scoped, tag = 'output window, operand 0']
    %12 = vsyncpa [#allocation3], 0
    %13 = vsyncpa [#allocation6], 0
    %14 = vsyncpa [#allocation4], 0
    %s15 = scalar_lea.sflag [#allocation4], 1
    %16 = vsyncpa %s15, 0
    loop: start=0, step=1, limit=4
    $region2: #{tpu_custom_call.1} parent=1 // loop_pre_header
      _
    $region3: #{tpu_custom_call.1} parent=1 // loop_header
      %s18 = sphi 0, %s22
      %p19 = scmp.ge.s32.totalorder %s18, 4
      %s28 = sphi 0, %s30
      %s31 = sphi 0, %s28
      %s32 = sphi 0, %s31
      %s48 = sphi 0, %s32
      %s54 = sphi 0, %s56
      %s57 = sphi 0, %s54
      %s58 = sphi 0, %s57
      %s74 = sphi 0, %s58
      %s78 = sphi 0, %s78
      %s80 = sphi 0, %s78
      %s81 = sphi 0, %s80
      %s95 = sphi 0, %s81
      %s99 = sphi 0, %s99
      %s101 = sphi 0, %s99
      %s102 = sphi 0, %s101
      %s116 = sphi 0, %s102
      %s120 = sphi 0, %s120
      %s122 = sphi 0, %s120
      %s123 = sphi 0, %s122
      %s137 = sphi 0, %s123
      %s141 = sphi 0, %s141
      %s143 = sphi 0, %s141
      %s144 = sphi 0, %s143
      %s158 = sphi 0, %s144
      %s162 = sphi 0, %s162
      %s164 = sphi 0, %s162
      %s165 = sphi 0, %s164
      %s179 = sphi 0, %s165
      %s185 = sphi 0, %s187
      %s188 = sphi 0, %s185
      %s189 = sphi 0, %s188
      %s205 = sphi 0, %s189
    $region4: #{tpu_custom_call.1} parent=1 // loop_header_branch
      %21 = sbr.rel (%p19) target = $region8
    $region5: #{tpu_custom_call.1} parent=1 // loop_body
      %s23 = ssub.s32 %s18, 1
      %s24 = ssub.s32 %s18, 2
      %s25 = sadd.s32 %s18, 1
      %s26 = ssub.s32 %s18, %s25
      %p27 = scmp.eq.s32.totalorder %s26, 0
      %s29 = sadd.s32 %s28, 1
      %s30 = scalar_select %p27, %s28, %s29
      %p33 = pneg %p27
      %p34 = scmp.eq.s32.totalorder %s18, 1
      %p35 = por %p33, %p34
      %p36 = scmp.ne.s32.totalorder %s28, %s31
      %p37 = scmp.eq.s32.totalorder %s18, 0
      %p38 = por %p36, %p37
      %p39 = scmp.ne.s32.totalorder %s28, %s31
      %p40 = scmp.eq.s32.totalorder %s23, 1
      %p41 = por %p39, %p40
      %p42 = scmp.ne.s32.totalorder %s31, %s32
      %p43 = scmp.eq.s32.totalorder %s23, 0
      %p44 = por %p42, %p43
      %p45 = scmp.ne.s32.totalorder %s31, %s32
      %p46 = scmp.eq.s32.totalorder %s24, 1
      %p47 = por %p45, %p46
      %p49 = scmp.ne.s32.totalorder %s32, %s48
      %p50 = scmp.eq.s32.totalorder %s24, 0
      %p51 = por %p49, %p50
      %s52 = ssub.s32 %s18, %s25
      %p53 = scmp.eq.s32.totalorder %s52, 0
      %s55 = sadd.s32 %s54, 1
      %s56 = scalar_select %p53, %s54, %s55
      %p59 = pneg %p53
      %p60 = scmp.eq.s32.totalorder %s18, 1
      %p61 = por %p59, %p60
      %p62 = scmp.ne.s32.totalorder %s54, %s57
      %p63 = scmp.eq.s32.totalorder %s18, 0
      %p64 = por %p62, %p63
      %p65 = scmp.ne.s32.totalorder %s54, %s57
      %p66 = scmp.eq.s32.totalorder %s23, 1
      %p67 = por %p65, %p66
      %p68 = scmp.ne.s32.totalorder %s57, %s58
      %p69 = scmp.eq.s32.totalorder %s23, 0
      %p70 = por %p68, %p69
      %p71 = scmp.ne.s32.totalorder %s57, %s58
      %p72 = scmp.eq.s32.totalorder %s24, 1
      %p73 = por %p71, %p72
      %p75 = scmp.ne.s32.totalorder %s58, %s74
      %p76 = scmp.eq.s32.totalorder %s24, 0
      %p77 = por %p75, %p76
      %s79 = sadd.s32 %s78, 1
      %p82 = scmp.eq.s32.totalorder %s18, 1
      %p83 = scmp.ne.s32.totalorder %s78, %s80
      %p84 = scmp.eq.s32.totalorder %s18, 0
      %p85 = por %p83, %p84
      %p86 = scmp.ne.s32.totalorder %s78, %s80
      %p87 = scmp.eq.s32.totalorder %s23, 1
      %p88 = por %p86, %p87
      %p89 = scmp.ne.s32.totalorder %s80, %s81
      %p90 = scmp.eq.s32.totalorder %s23, 0
      %p91 = por %p89, %p90
      %p92 = scmp.ne.s32.totalorder %s80, %s81
      %p93 = scmp.eq.s32.totalorder %s24, 1
      %p94 = por %p92, %p93
      %p96 = scmp.ne.s32.totalorder %s81, %s95
      %p97 = scmp.eq.s32.totalorder %s24, 0
      %p98 = por %p96, %p97
      %s100 = sadd.s32 %s99, 1
      %p103 = scmp.eq.s32.totalorder %s18, 1
      %p104 = scmp.ne.s32.totalorder %s99, %s101
      %p105 = scmp.eq.s32.totalorder %s18, 0
      %p106 = por %p104, %p105
      %p107 = scmp.ne.s32.totalorder %s99, %s101
      %p108 = scmp.eq.s32.totalorder %s23, 1
      %p109 = por %p107, %p108
      %p110 = scmp.ne.s32.totalorder %s101, %s102
      %p111 = scmp.eq.s32.totalorder %s23, 0
      %p112 = por %p110, %p111
      %p113 = scmp.ne.s32.totalorder %s101, %s102
      %p114 = scmp.eq.s32.totalorder %s24, 1
      %p115 = por %p113, %p114
      %p117 = scmp.ne.s32.totalorder %s102, %s116
      %p118 = scmp.eq.s32.totalorder %s24, 0
      %p119 = por %p117, %p118
      %s121 = sadd.s32 %s120, 1
      %p124 = scmp.eq.s32.totalorder %s18, 1
      %p125 = scmp.ne.s32.totalorder %s120, %s122
      %p126 = scmp.eq.s32.totalorder %s18, 0
      %p127 = por %p125, %p126
      %p128 = scmp.ne.s32.totalorder %s120, %s122
      %p129 = scmp.eq.s32.totalorder %s23, 1
      %p130 = por %p128, %p129
      %p131 = scmp.ne.s32.totalorder %s122, %s123
      %p132 = scmp.eq.s32.totalorder %s23, 0
      %p133 = por %p131, %p132
      %p134 = scmp.ne.s32.totalorder %s122, %s123
      %p135 = scmp.eq.s32.totalorder %s24, 1
      %p136 = por %p134, %p135
      %p138 = scmp.ne.s32.totalorder %s123, %s137
      %p139 = scmp.eq.s32.totalorder %s24, 0
      %p140 = por %p138, %p139
      %s142 = sadd.s32 %s141, 1
      %p145 = scmp.eq.s32.totalorder %s18, 1
      %p146 = scmp.ne.s32.totalorder %s141, %s143
      %p147 = scmp.eq.s32.totalorder %s18, 0
      %p148 = por %p146, %p147
      %p149 = scmp.ne.s32.totalorder %s141, %s143
      %p150 = scmp.eq.s32.totalorder %s23, 1
      %p151 = por %p149, %p150
      %p152 = scmp.ne.s32.totalorder %s143, %s144
      %p153 = scmp.eq.s32.totalorder %s23, 0
      %p154 = por %p152, %p153
      %p155 = scmp.ne.s32.totalorder %s143, %s144
      %p156 = scmp.eq.s32.totalorder %s24, 1
      %p157 = por %p155, %p156
      %p159 = scmp.ne.s32.totalorder %s144, %s158
      %p160 = scmp.eq.s32.totalorder %s24, 0
      %p161 = por %p159, %p160
      %s163 = sadd.s32 %s162, 1
      %p166 = scmp.eq.s32.totalorder %s18, 1
      %p167 = scmp.ne.s32.totalorder %s162, %s164
      %p168 = scmp.eq.s32.totalorder %s18, 0
      %p169 = por %p167, %p168
      %p170 = scmp.ne.s32.totalorder %s162, %s164
      %p171 = scmp.eq.s32.totalorder %s23, 1
      %p172 = por %p170, %p171
      %p173 = scmp.ne.s32.totalorder %s164, %s165
      %p174 = scmp.eq.s32.totalorder %s23, 0
      %p175 = por %p173, %p174
      %p176 = scmp.ne.s32.totalorder %s164, %s165
      %p177 = scmp.eq.s32.totalorder %s24, 1
      %p178 = por %p176, %p177
      %p180 = scmp.ne.s32.totalorder %s165, %s179
      %p181 = scmp.eq.s32.totalorder %s24, 0
      %p182 = por %p180, %p181
      %s183 = ssub.s32 %s18, %s25
      %p184 = scmp.eq.s32.totalorder %s183, 0
      %s186 = sadd.s32 %s185, 1
      %s187 = scalar_select %p184, %s185, %s186
      %p190 = pneg %p184
      %p191 = scmp.eq.s32.totalorder %s18, 1
      %p192 = por %p190, %p191
      %p193 = scmp.ne.s32.totalorder %s185, %s188
      %p194 = scmp.eq.s32.totalorder %s18, 0
      %p195 = por %p193, %p194
      %p196 = scmp.ne.s32.totalorder %s185, %s188
      %p197 = scmp.eq.s32.totalorder %s23, 1
      %p198 = por %p196, %p197
      %p199 = scmp.ne.s32.totalorder %s188, %s189
      %p200 = scmp.eq.s32.totalorder %s23, 0
      %p201 = por %p199, %p200
      %p202 = scmp.ne.s32.totalorder %s188, %s189
      %p203 = scmp.eq.s32.totalorder %s24, 1
      %p204 = por %p202, %p203
      %p206 = scmp.ne.s32.totalorder %s189, %s205
      %p207 = scmp.eq.s32.totalorder %s24, 0
      %p208 = por %p206, %p207
      %p209 = scmp.le.s32.totalorder 1, %s18
      %p210 = scmp.lt.s32.totalorder %s18, 3
      %p211 = pnand %p209, %p210
      %p212 = pneg %p211
      // Predicated region
      $region9: #{tpu_custom_call.1} parent=5 // pred_check
        _
      $region10: #{tpu_custom_call.1} parent=5 // pred_check_branch
        %214 = sbr.rel (%p211) target = $region12
      $region11: #{tpu_custom_call.1} parent=5 // pred_region
        %s215 = ssub.s32 %s18, 1
        // Predicated region
        $region13: #{tpu_custom_call.1} parent=11 // pred_check
          %p216 = pneg %p91
        $region14: #{tpu_custom_call.1} parent=11 // pred_check_branch
          %218 = sbr.rel (%p216) target = $region16
        $region15: #{tpu_custom_call.1} parent=11 // pred_region
          %220 = vsyncadd [#allocation3], 0
          %s222 = sshll.u32 %s2, 4
          %s223 = int_to_ptr.hbm [resolvable:$true] %s222
          %s224 = sshll.u32 [#allocation2], 4
          %s225 = int_to_ptr.vmem [resolvable:$true] %s224
          %227 = dma.hbm_to_vmem [thread:$0]  %s223, 128, %s225, [#allocation3]
        $region16: #{tpu_custom_call.1} parent=11 // pred_fallthru
          _
        // Predicated region
        $region17: #{tpu_custom_call.1} parent=11 // pred_check
          %p228 = pneg %p112
        $region18: #{tpu_custom_call.1} parent=11 // pred_check_branch
          %230 = sbr.rel (%p228) target = $region20
        $region19: #{tpu_custom_call.1} parent=11 // pred_region
          _
        $region20: #{tpu_custom_call.1} parent=11 // pred_fallthru
          _
        // Predicated region
        $region21: #{tpu_custom_call.1} parent=11 // pred_check
          %p231 = pneg %p133
        $region22: #{tpu_custom_call.1} parent=11 // pred_check_branch
          %233 = sbr.rel (%p231) target = $region24
        $region23: #{tpu_custom_call.1} parent=11 // pred_region
          _
        $region24: #{tpu_custom_call.1} parent=11 // pred_fallthru
          _
        // Predicated region
        $region25: #{tpu_custom_call.1} parent=11 // pred_check
          %p234 = pneg %p154
        $region26: #{tpu_custom_call.1} parent=11 // pred_check_branch
          %236 = sbr.rel (%p234) target = $region28
        $region27: #{tpu_custom_call.1} parent=11 // pred_region
          %238 = vsyncadd [#allocation6], 0
          %s239 = sshll.u32 %s5, 4
          %s240 = int_to_ptr.hbm [resolvable:$true] %s239
          %s241 = sshll.u32 [#allocation5], 4
          %s242 = int_to_ptr.vmem [resolvable:$true] %s241
          %247 = dma.hbm_to_vmem [thread:$0]  %s240, 128, %s242, [#allocation6], 64, 64, 4
        $region28: #{tpu_custom_call.1} parent=11 // pred_fallthru
          _
        // Predicated region
        $region29: #{tpu_custom_call.1} parent=11 // pred_check
          %p248 = pneg %p175
        $region30: #{tpu_custom_call.1} parent=11 // pred_check_branch
          %250 = sbr.rel (%p248) target = $region32
        $region31: #{tpu_custom_call.1} parent=11 // pred_region
          _
        $region32: #{tpu_custom_call.1} parent=11 // pred_fallthru
          _
      $region12: #{tpu_custom_call.1} parent=5 // pred_fallthru
        _
      %p251 = scmp.lt.s32.totalorder %s18, 2
      // Predicated region
      $region33: #{tpu_custom_call.1} parent=5 // pred_check
        %p252 = pneg %p251
      $region34: #{tpu_custom_call.1} parent=5 // pred_check_branch
        %254 = sbr.rel (%p252) target = $region36
      $region35: #{tpu_custom_call.1} parent=5 // pred_region
        // Predicated region
        $region37: #{tpu_custom_call.1} parent=35 // pred_check
          %p255 = pneg %p38
        $region38: #{tpu_custom_call.1} parent=35 // pred_check_branch
          %257 = sbr.rel (%p255) target = $region40
        $region39: #{tpu_custom_call.1} parent=35 // pred_region
          %p258 = scmp.lt.s32.totalorder %s18, 1
          %s259 = scalar_select %p258, %s18, 1
          %s260 = smul.addr %s259, 4
          %s261 = scalar_lea.vmem %s0, %s260
        $region40: #{tpu_custom_call.1} parent=35 // pred_fallthru
          _
        // Predicated region
        $region41: #{tpu_custom_call.1} parent=35 // pred_check
          %p262 = pneg %p64
        $region42: #{tpu_custom_call.1} parent=35 // pred_check_branch
          %264 = sbr.rel (%p262) target = $region44
        $region43: #{tpu_custom_call.1} parent=35 // pred_region
          %p265 = scmp.lt.s32.totalorder %s18, 1
          %s266 = scalar_select %p265, %s18, 1
          %s267 = smul.addr %s266, 8
          %s268 = scalar_lea.vmem %s1, %s267
        $region44: #{tpu_custom_call.1} parent=35 // pred_fallthru
          _
      $region36: #{tpu_custom_call.1} parent=5 // pred_fallthru
        _
      %p269 = scmp.le.s32.totalorder 1, %s18
      %p270 = scmp.lt.s32.totalorder %s18, 3
      %p271 = pnand %p269, %p270
      %p272 = pneg %p271
      // Predicated region
      $region45: #{tpu_custom_call.1} parent=5 // pred_check
        _
      $region46: #{tpu_custom_call.1} parent=5 // pred_check_branch
        %274 = sbr.rel (%p271) target = $region48
      $region47: #{tpu_custom_call.1} parent=5 // pred_region
        %s275 = ssub.s32 %s18, 1
        // Predicated region
        $region49: #{tpu_custom_call.1} parent=47 // pred_check
          %p276 = pneg %p91
        $region50: #{tpu_custom_call.1} parent=47 // pred_check_branch
          %278 = sbr.rel (%p276) target = $region52
        $region51: #{tpu_custom_call.1} parent=47 // pred_region
          %280 = dma.done [#allocation3], 128
        $region52: #{tpu_custom_call.1} parent=47 // pred_fallthru
          _
        // Predicated region
        $region53: #{tpu_custom_call.1} parent=47 // pred_check
          %p281 = pneg %p154
        $region54: #{tpu_custom_call.1} parent=47 // pred_check_branch
          %283 = sbr.rel (%p281) target = $region56
        $region55: #{tpu_custom_call.1} parent=47 // pred_region
          %285 = dma.done [#allocation6], 128
        $region56: #{tpu_custom_call.1} parent=47 // pred_fallthru
          _
        %p286 = scmp.lt.s32.totalorder %s23, 1
        %s287 = scalar_select %p286, %s23, 1
        %s288 = smul.addr %s287, 4
        %s289 = scalar_lea.vmem %s0, %s288
        %p290 = pneg %p44
        %p291 = pneg %p41
        %p292 = scmp.lt.s32.totalorder %s23, 1
        %s293 = scalar_select %p292, %s23, 1
        %s294 = smul.addr %s293, 8
        %s295 = scalar_lea.vmem %s1, %s294
        %p296 = pneg %p70
        %p297 = pneg %p67
        %p298 = pneg %p91
        %p299 = pneg %p88
        %p300 = pneg %p112
        %p301 = pneg %p109
        %p302 = pneg %p133
        %p303 = pneg %p130
        %p304 = pneg %p154
        %p305 = pneg %p151
        %p306 = pneg %p175
        %p307 = pneg %p172
        %p308 = pneg %p201
        %p309 = pneg %p198
        %s310 = sand.u32 %s188, 1
        %s311 = scalar_lea.sflag [#allocation4], %s310
        %s312 = sand.u32 %s188, 1
        %s313 = smul.addr %s312, 8
        %s314 = scalar_lea.vmem [#allocation7], %s313
        %p315 = scmp.lt.s32.totalorder %s23, 1
        %s316 = scalar_select %p315, %s23, 1
        %s317 = smul.addr %s316, 4
        %s318 = scalar_lea.vmem %s0, %s317
        %p319 = scmp.lt.s32.totalorder %s23, 1
        %s320 = scalar_select %p319, %s23, 1
        %s321 = smul.addr %s320, 8
        %s322 = scalar_lea.vmem %s1, %s321
        %v324 = vld [vmem:[%s318] sm:$0xf]
        %v325 = vld [vmem:[%s322] sm:$0xff]
        %v326 = vld [vmem:[#allocation2] sm:$0x1]
        %328 = vset.pattern.permute.xlu0 0
        %329 = vperm.xlu0 %328, %v325
        %v330 = vpop.permute.xlu0 %329
        %v332 = vperm.slane %v326, 0
        %v333 = vmul.f32 %v330, %v332
        %v334 = vld [vmem:[#allocation2 + $0x1] sm:$0x1]
        %335 = vset.pattern.permute.xlu0 1
        %336 = vperm.xlu0 %335, %v325
        %v337 = vpop.permute.xlu0 %336
        %v339 = vperm.slane %v334, 0
        %v340 = vmul.f32 %v337, %v339
        %v341 = vadd.f32 %v333, %v340
        %v342 = vld [vmem:[#allocation2 + $0x2] sm:$0x1]
        %343 = vset.pattern.permute.xlu0 2
        %344 = vperm.xlu0 %343, %v325
        %v345 = vpop.permute.xlu0 %344
        %v347 = vperm.slane %v342, 0
        %v348 = vmul.f32 %v345, %v347
        %v349 = vadd.f32 %v341, %v348
        %v350 = vld [vmem:[#allocation2 + $0x3] sm:$0x1]
        %351 = vset.pattern.permute.xlu0 3
        %352 = vperm.xlu0 %351, %v325
        %v353 = vpop.permute.xlu0 %352
        %v355 = vperm.slane %v350, 0
        %v356 = vmul.f32 %v353, %v355
        %v357 = vadd.f32 %v349, %v356
        %v358 = vld [vmem:[#allocation2 + $0x4] sm:$0x1]
        %359 = vset.pattern.permute.xlu0 4
        %360 = vperm.xlu0 %359, %v325
        %v361 = vpop.permute.xlu0 %360
        %v363 = vperm.slane %v358, 0
        %v364 = vmul.f32 %v361, %v363
        %v365 = vadd.f32 %v357, %v364
        %v366 = vld [vmem:[%s3] sm:$0x1]
        %v368 = vperm.slane %v366, 0
        %v370 = vadd.f32 %v365, %v368
        %v371 = vld [vmem:[%s4] sm:$0xf]
        %v372 = vld [vmem:[%s4 + $0x4] sm:$0xf]
        %v373 = vld [vmem:[%s4 + $0x8] sm:$0xf]
        %v374 = vld [vmem:[%s4 + $0xc] sm:$0xf]
        %v375 = vpack.c.bf16 %v370, %v370
        %v376 = vld [vmem:[#allocation5] sm:$0xf]
        %v377 = vld [vmem:[#allocation5 + $0x4] sm:$0xf]
        %v380 = vunpack.c.l.b16 %v376
        %v381 = vunpack.c.l.b16 %v377
        %v382 = vpack.c.b16 %v381, %v380
        %vm384 = vcmask 130048
        %v386 = vsel %vm384, %v375, 0
        %388 = vmatpush.bf16.msra.mxu0 0
        %389 = vmatpush.bf16.msra.mxu0 0
        %390 = vmatpush.bf16.msra.mxu0 0
        %391 = vmatpush.bf16.msra.mxu0 0
        %392 = vmatpush.bf16.msra.mxu0 0
        %393 = vmatpush.bf16.msra.mxu0 0
        %394 = vmatpush.bf16.msra.mxu0 0
        %395 = vmatpush.bf16.msra.mxu0 %v382
        %396 = vmatmul.bf16.gmra.mxu0 %v386
        %v397 = vpop.f32.mrf.mxu0
        %v398 = vadd.f32 0.0, %v397
        %v399 = vpop.f32.mrf.mxu0
        %400 = vdwg.mxu0
        %v405 = vunpack.c.l.b16 %v371
        %v406 = vunpack.c.l.b16 %v372
        %v407 = vunpack.c.l.b16 %v373
        %v408 = vunpack.c.l.b16 %v374
        %v409 = vpack.c.b16 %v406, %v405
        %v410 = vpack.c.b16 %v408, %v407
        %vm413 = vcmask 261120
        %v415 = vsel %vm413, %v324, 0
        %417 = vmatpush.bf16.msra.mxu0 0
        %418 = vmatpush.bf16.msra.mxu0 0
        %419 = vmatpush.bf16.msra.mxu0 0
        %420 = vmatpush.bf16.msra.mxu0 0
        %421 = vmatpush.bf16.msra.mxu0 0
        %422 = vmatpush.bf16.msra.mxu0 0
        %423 = vmatpush.bf16.msra.mxu0 %v410
        %424 = vmatpush.bf16.msra.mxu0 %v409
        %425 = vmatmul.bf16.gmra.mxu0 %v415
        %v426 = vpop.f32.mrf.mxu0
        %v427 = vadd.f32 %v398, %v426
        %v428 = vpop.f32.mrf.mxu0
        %429 = vdwg.mxu0
        %v430 = vld [vmem:[%s6] sm:$0x1]
        %v432 = vperm.slane %v430, 0
        %v434 = vadd.f32 %v427, %v432
        %435 = vst.msk [vmem:[%s314] sm:$0xff] %vm413, %v434
        %s436 = sand.u32 %s188, 1
        %s437 = scalar_lea.sflag [#allocation4], %s436
        %s438 = sand.u32 %s188, 1
        %s439 = smul.addr %s438, 8
        %s440 = scalar_lea.vmem [#allocation7], %s439
        // Predicated region
        $region57: #{tpu_custom_call.1} parent=47 // pred_check
          %p441 = pneg %p198
        $region58: #{tpu_custom_call.1} parent=47 // pred_check_branch
          %443 = sbr.rel (%p441) target = $region60
        $region59: #{tpu_custom_call.1} parent=47 // pred_region
          %445 = vsyncadd %s437, 0
          %s446 = smul.addr %s23, 8
          %s447 = scalar_lea.hbm %s7, %s446
          %s449 = sshll.u32 %s440, 4
          %s450 = int_to_ptr.vmem [resolvable:$true] %s449
          %s451 = sshll.u32 %s447, 4
          %s452 = int_to_ptr.hbm [resolvable:$true] %s451
          %454 = dma.vmem_to_hbm [thread:$0]  %s450, 128, %s452, %s437
        $region60: #{tpu_custom_call.1} parent=47 // pred_fallthru
          _
      $region48: #{tpu_custom_call.1} parent=5 // pred_fallthru
        _
      %p455 = scmp.le.s32.totalorder 2, %s18
      // Predicated region
      $region61: #{tpu_custom_call.1} parent=5 // pred_check
        %p456 = pneg %p455
      $region62: #{tpu_custom_call.1} parent=5 // pred_check_branch
        %458 = sbr.rel (%p456) target = $region64
      $region63: #{tpu_custom_call.1} parent=5 // pred_region
        %s459 = ssub.s32 %s18, 2
        // Predicated region
        $region65: #{tpu_custom_call.1} parent=63 // pred_check
          %p460 = pneg %p204
        $region66: #{tpu_custom_call.1} parent=63 // pred_check_branch
          %462 = sbr.rel (%p460) target = $region68
        $region67: #{tpu_custom_call.1} parent=63 // pred_region
          %s463 = sand.u32 %s189, 1
          %s464 = scalar_lea.sflag [#allocation4], %s463
          %s465 = sand.u32 %s189, 1
          %s466 = smul.addr %s465, 8
          %s467 = scalar_lea.vmem [#allocation7], %s466
          %469 = dma.done %s464, 128
        $region68: #{tpu_custom_call.1} parent=63 // pred_fallthru
          _
      $region64: #{tpu_custom_call.1} parent=5 // pred_fallthru
        _
    $region6: #{tpu_custom_call.1} parent=1 // loop_footer
      %s22 = sadd.s32 1, %s18
    $region7: #{tpu_custom_call.1} parent=1 // loop_footer_branch
      %17 = sbr.rel target = $region3
    $region8: #{tpu_custom_call.1} parent=1 // loop_exit
      _
    %470 = vsyncpa [#allocation3], 1
    %s471 = scalar_lea.sflag [#allocation3], 1
    %472 = vsyncpa %s471, 1
    %473 = vsyncpa [#allocation6], 1
    %474 = vsyncpa [#allocation4], 1
    %s475 = scalar_lea.sflag [#allocation4], 1
    %476 = vsyncpa %s475, 1

</llo_original>
